<compile_context>
chip_gen: v7x
topology: tpu7x:2x2x1
jax: 0.10.0
libtpu: 0.0.40
codegen_flags: <defaults>
</compile_context>

<pallas_src>
import functools

import jax
import jax.numpy as jnp
from jax.experimental import pallas as pl
from jax.experimental.pallas import tpu as pltpu


def _iou_kernel(p_ref, t_ref, o_ref, inter_acc, union_acc, *,
                smooth, thresh, rem):
    # p_ref/t_ref: (BT, NT) blocks in the input dtype
    # o_ref: (BT, 1) float32; inter_acc/union_acc: (BT, 1) int32 scratch
    # rem: static remainder N % n_tile (0 => no ragged tail, no mask ever)
    k = pl.program_id(1)
    nk = pl.num_programs(1)

    @pl.when(k == 0)
    def _init():
        inter_acc[...] = jnp.zeros_like(inter_acc)
        union_acc[...] = jnp.zeros_like(union_acc)

    def _accumulate(mask_tail):
        p = p_ref[...] >= thresh
        t = t_ref[...] >= thresh
        if mask_tail:
            # Loop-invariant iota compared against the static remainder:
            # masks the undefined lanes of the (single) ragged last tile.
            valid = jax.lax.broadcasted_iota(jnp.int32, p.shape, 1) < rem
            p = jnp.logical_and(p, valid)
            t = jnp.logical_and(t, valid)
        inter_acc[...] += jnp.sum(jnp.logical_and(p, t).astype(jnp.int32),
                                  axis=1, keepdims=True)
        union_acc[...] += jnp.sum(jnp.logical_or(p, t).astype(jnp.int32),
                                  axis=1, keepdims=True)

    if rem:
        # Steady state: unmasked.  Last (ragged) tile: masked.
        @pl.when(k < nk - 1)
        def _steady():
            _accumulate(False)

        @pl.when(k == nk - 1)
        def _tail():
            _accumulate(True)
    else:
        _accumulate(False)

    @pl.when(k == nk - 1)
    def _finalize():
        inter = inter_acc[...].astype(jnp.float32)
        union = union_acc[...].astype(jnp.float32)
        # Garbage rows of a partial batch tile are discarded on writeback.
        o_ref[...] = (inter + smooth) / (union + smooth)


def iou_coeff(predicts, targets, smooth=1e-6, thresh=0.5,
              block_bytes=4 * 1024 * 1024):
    assert predicts.shape == targets.shape
    B = predicts.shape[0]
    p = predicts.reshape(B, -1)   # view, no HBM copy
    t = targets.reshape(B, -1)
    N = p.shape[1]

    itemsize = jnp.dtype(p.dtype).itemsize
    # Dtype-aware batch tile: match native sublane packing (f32 -> 8,
    # bf16/f16 -> 16, int8/fp8 -> 32).  If B <= sublane, take the full batch
    # dim (allowed as a full-extent block).  If B > sublane, the parallel
    # batch axis gets >= 2 blocks, so both TCs get work on v7x.
    sublane = {4: 8, 2: 16, 1: 32}.get(itemsize, 8)
    batch_tile = sublane if B > sublane else B

    # Lane tile: aim for ~block_bytes per input block (multiple of 128 lanes).
    n_tile = max(128, (block_bytes // (batch_tile * itemsize)) // 128 * 128)
    if n_tile >= N:
        n_tile = N        # single full-extent block: exact, no mask needed
        rem = 0
    else:
        rem = N % n_tile  # static ragged remainder (0 => no mask)

    grid = (pl.cdiv(B, batch_tile), pl.cdiv(N, n_tile))

    kernel = functools.partial(_iou_kernel, smooth=smooth, thresh=thresh,
                               rem=rem)

    # VMEM limit derived from the actual pipeline footprint:
    # 2 inputs x 2 buffers x block + slack, clamped to a safe range.
    block_b = batch_tile * n_tile * itemsize
    vmem_limit = int(min(max(2 * 2 * block_b + (8 << 20), 16 << 20), 56 << 20))

    out = pl.pallas_call(
        kernel,
        out_shape=jax.ShapeDtypeStruct((B, 1), jnp.float32),
        grid=grid,
        in_specs=[
            pl.BlockSpec((batch_tile, n_tile), lambda i, k: (i, k)),
            pl.BlockSpec((batch_tile, n_tile), lambda i, k: (i, k)),
        ],
        out_specs=pl.BlockSpec((batch_tile, 1), lambda i, k: (i, 0)),
        scratch_shapes=[
            pltpu.VMEM((batch_tile, 1), jnp.int32),
            pltpu.VMEM((batch_tile, 1), jnp.int32),
        ],
        compiler_params=pltpu.CompilerParams(
            dimension_semantics=("parallel", "arbitrary"),
            vmem_limit_bytes=vmem_limit),
    )(p, t)

    return out[:, 0]  # (B,) float32, matches torch result shape


def _reference(predicts, targets, smooth=1e-6, thresh=0.5):
    B = predicts.shape[0]
    p = predicts.reshape(B, -1) >= thresh
    t = targets.reshape(B, -1) >= thresh
    inter = jnp.sum(jnp.logical_and(p, t), axis=1).astype(jnp.float32)
    union = jnp.sum(jnp.logical_or(p, t), axis=1).astype(jnp.float32)
    return (inter + smooth) / (union + smooth)


if __name__ == "__main__":
    key = jax.random.PRNGKey(0)
    k1, k2 = jax.random.split(key)

    # NCHW, small shapes: batch=2, channels=4, spatial=16x16
    predicts = jax.random.uniform(k1, (2, 4, 16, 16), dtype=jnp.float32)
    targets = jax.random.uniform(k2, (2, 4, 16, 16), dtype=jnp.float32)

    iou = iou_coeff(predicts, targets)
    jax.block_until_ready(iou)
    ref = _reference(predicts, targets)
    assert iou.shape == (2,)
    assert jnp.allclose(iou, ref, rtol=1e-6, atol=1e-6), (iou, ref)

    # Ragged case: N=300 (not a multiple of 128, handled by a full-extent
    # lane block) and a small batch B=3 (full-extent batch block).
    k3, k4 = jax.random.split(k2)
    pr = jax.random.uniform(k3, (3, 3, 10, 10), dtype=jnp.float32)
    tr = jax.random.uniform(k4, (3, 3, 10, 10), dtype=jnp.float32)
    iou_r = iou_coeff(pr, tr)
    jax.block_until_ready(iou_r)
    assert jnp.allclose(iou_r, _reference(pr, tr), rtol=1e-6, atol=1e-6)

    # Multi-tile reduction case: B=16 (two batch blocks on the parallel axis),
    # small block_bytes to force several N tiles plus a ragged last tile, so
    # the k<nk-1 / k==nk-1 masked-tail split is exercised.
    k5, k6 = jax.random.split(k4)
    pm = jax.random.uniform(k5, (16, 4, 20, 20), dtype=jnp.float32)  # N=1600
    tm = jax.random.uniform(k6, (16, 4, 20, 20), dtype=jnp.float32)
    iou_m = iou_coeff(pm, tm, block_bytes=16 * 1024)  # n_tile=512 -> rem=64
    jax.block_until_ready(iou_m)
    assert jnp.allclose(iou_m, _reference(pm, tm), rtol=1e-6, atol=1e-6)

    print("KERNEL_OK")
</pallas_src>

<mosaic_0001>
module attributes {stable_mosaic.version = 11 : i64} {
  func.func @_iou_kernel(%arg0: i32, %arg1: i32, %arg2: memref<2x1024xf32, #tpu.memory_space<vmem>>, %arg3: memref<2x1024xf32, #tpu.memory_space<vmem>>, %arg4: memref<2x1xf32, #tpu.memory_space<vmem>>, %arg5: memref<2x1xi32, #tpu.memory_space<vmem>>, %arg6: memref<2x1xi32, #tpu.memory_space<vmem>>) attributes {dimension_semantics = [#tpu.dimension_semantics<parallel>, #tpu.dimension_semantics<arbitrary>], iteration_bounds = array<i64: 1, 1>, scalar_prefetch = 0 : i64, scratch_operands = 2 : i64, tpu.core_type = #tpu.core_type<tc>, window_params = [{transform_indices = @transform_0, window_bounds = array<i64: 2, 1024>}, {transform_indices = @transform_1, window_bounds = array<i64: 2, 1024>}, {transform_indices = @transform_2, window_bounds = array<i64: 2, 1>}]} {
    %c0_i32 = arith.constant 0 : i32
    %0 = arith.cmpi eq, %arg1, %c0_i32 : i32
    %1 = arith.extui %0 : i1 to i32
    %c0_i32_0 = arith.constant 0 : i32
    %2 = arith.cmpi ne, %1, %c0_i32_0 : i32
    scf.if %2 {
      %c0_i32_17 = arith.constant 0 : i32
      %26 = vector.broadcast %c0_i32_17 : i32 to vector<2x1xi32>
      %c0_18 = arith.constant 0 : index
      %c0_19 = arith.constant 0 : index
      %27 = vector.load %arg5[%c0_18, %c0_19] : memref<2x1xi32, #tpu.memory_space<vmem>>, vector<2x1xi32>
      tpu.vector_store %arg5[%c0_18, %c0_19], %26 {strides = array<i32>} : memref<2x1xi32, #tpu.memory_space<vmem>>, vector<2x1xi32>,
      %c0_i32_20 = arith.constant 0 : i32
      %28 = vector.broadcast %c0_i32_20 : i32 to vector<2x1xi32>
      %c0_21 = arith.constant 0 : index
      %c0_22 = arith.constant 0 : index
      %29 = vector.load %arg6[%c0_21, %c0_22] : memref<2x1xi32, #tpu.memory_space<vmem>>, vector<2x1xi32>
      tpu.vector_store %arg6[%c0_21, %c0_22], %28 {strides = array<i32>} : memref<2x1xi32, #tpu.memory_space<vmem>>, vector<2x1xi32>,
    } else {
    }
    %c0 = arith.constant 0 : index
    %c0_1 = arith.constant 0 : index
    %3 = vector.load %arg2[%c0, %c0_1] : memref<2x1024xf32, #tpu.memory_space<vmem>>, vector<2x1024xf32>
    %cst = arith.constant 5.000000e-01 : f32
    %4 = vector.broadcast %cst : f32 to vector<2x1024xf32>
    %5 = arith.cmpf oge, %3, %4 : vector<2x1024xf32>
    %c0_2 = arith.constant 0 : index
    %c0_3 = arith.constant 0 : index
    %6 = vector.load %arg3[%c0_2, %c0_3] : memref<2x1024xf32, #tpu.memory_space<vmem>>, vector<2x1024xf32>
    %cst_4 = arith.constant 5.000000e-01 : f32
    %7 = vector.broadcast %cst_4 : f32 to vector<2x1024xf32>
    %8 = arith.cmpf oge, %6, %7 : vector<2x1024xf32>
    %c0_5 = arith.constant 0 : index
    %c0_6 = arith.constant 0 : index
    %9 = vector.load %arg5[%c0_5, %c0_6] : memref<2x1xi32, #tpu.memory_space<vmem>>, vector<2x1xi32>
    %10 = arith.andi %5, %8 : vector<2x1024xi1>
    %11 = arith.extui %10 : vector<2x1024xi1> to vector<2x1024xi32>
    %cst_7 = arith.constant dense<0> : vector<2xi32>
    %12 = vector.multi_reduction <add>, %11, %cst_7 [1] : vector<2x1024xi32> to vector<2xi32>
    %13 = vector.shape_cast %12 : vector<2xi32> to vector<2x1xi32>
    %14 = arith.addi %9, %13 : vector<2x1xi32>
    %c0_8 = arith.constant 0 : index
    %c0_9 = arith.constant 0 : index
    %15 = vector.load %arg5[%c0_8, %c0_9] : memref<2x1xi32, #tpu.memory_space<vmem>>, vector<2x1xi32>
    tpu.vector_store %arg5[%c0_8, %c0_9], %14 {strides = array<i32>} : memref<2x1xi32, #tpu.memory_space<vmem>>, vector<2x1xi32>,
    %c0_10 = arith.constant 0 : index
    %c0_11 = arith.constant 0 : index
    %16 = vector.load %arg6[%c0_10, %c0_11] : memref<2x1xi32, #tpu.memory_space<vmem>>, vector<2x1xi32>
    %17 = arith.ori %5, %8 : vector<2x1024xi1>
    %18 = arith.extui %17 : vector<2x1024xi1> to vector<2x1024xi32>
    %cst_12 = arith.constant dense<0> : vector<2xi32>
    %19 = vector.multi_reduction <add>, %18, %cst_12 [1] : vector<2x1024xi32> to vector<2xi32>
    %20 = vector.shape_cast %19 : vector<2xi32> to vector<2x1xi32>
    %21 = arith.addi %16, %20 : vector<2x1xi32>
    %c0_13 = arith.constant 0 : index
    %c0_14 = arith.constant 0 : index
    %22 = vector.load %arg6[%c0_13, %c0_14] : memref<2x1xi32, #tpu.memory_space<vmem>>, vector<2x1xi32>
    tpu.vector_store %arg6[%c0_13, %c0_14], %21 {strides = array<i32>} : memref<2x1xi32, #tpu.memory_space<vmem>>, vector<2x1xi32>,
    %c0_i32_15 = arith.constant 0 : i32
    %23 = arith.cmpi eq, %arg1, %c0_i32_15 : i32
    %24 = arith.extui %23 : i1 to i32
    %c0_i32_16 = arith.constant 0 : i32
    %25 = arith.cmpi ne, %24, %c0_i32_16 : i32
    scf.if %25 {
      %c0_17 = arith.constant 0 : index
      %c0_18 = arith.constant 0 : index
      %26 = vector.load %arg5[%c0_17, %c0_18] : memref<2x1xi32, #tpu.memory_space<vmem>>, vector<2x1xi32>
      %27 = arith.sitofp %26 : vector<2x1xi32> to vector<2x1xf32>
      %c0_19 = arith.constant 0 : index
      %c0_20 = arith.constant 0 : index
      %28 = vector.load %arg6[%c0_19, %c0_20] : memref<2x1xi32, #tpu.memory_space<vmem>>, vector<2x1xi32>
      %29 = arith.sitofp %28 : vector<2x1xi32> to vector<2x1xf32>
      %cst_21 = arith.constant 9.99999997E-7 : f32
      %30 = vector.broadcast %cst_21 : f32 to vector<2x1xf32>
      %31 = arith.addf %27, %30 : vector<2x1xf32>
      %cst_22 = arith.constant 9.99999997E-7 : f32
      %32 = vector.broadcast %cst_22 : f32 to vector<2x1xf32>
      %33 = arith.addf %29, %32 : vector<2x1xf32>
      %34 = arith.divf %31, %33 : vector<2x1xf32>
      %c0_23 = arith.constant 0 : index
      %c0_24 = arith.constant 0 : index
      %35 = vector.load %arg4[%c0_23, %c0_24] : memref<2x1xf32, #tpu.memory_space<vmem>>, vector<2x1xf32>
      tpu.vector_store %arg4[%c0_23, %c0_24], %34 {strides = array<i32>} : memref<2x1xf32, #tpu.memory_space<vmem>>, vector<2x1xf32>,
    } else {
    }
    return
  }
  func.func @transform_0(%arg0: i32, %arg1: i32) -> (i32, i32) {
    %c0_i32 = arith.constant 0 : i32
    return %arg0, %arg1 : i32, i32
  }
  func.func @transform_1(%arg0: i32, %arg1: i32) -> (i32, i32) {
    %c0_i32 = arith.constant 0 : i32
    return %arg0, %arg1 : i32, i32
  }
  func.func @transform_2(%arg0: i32, %arg1: i32) -> (i32, i32) {
    %c0_i32 = arith.constant 0 : i32
    %c0_i32_0 = arith.constant 0 : i32
    return %arg0, %c0_i32 : i32, i32
  }
}

</mosaic_0001>

<llo_original>
// kernel: tpu_custom_call.1
$region0: #{tpu_custom_call.1}
  #allocation0 [shape = 'u32[]', space=smem, size = 0x4, offset = 0x4, fixed_abs, tag = 'smem constant byte address 0x4 - core index']
  #allocation1 [shape = 'u32[144,128]{1,0:T(1,128)}', space=vmem, size = 0x12000, scoped, tag = 'internal scratch']
  #allocation2 [shape = 's32[2,1]{1,0:T(2,128)}', space=vmem, size = 0x400, scoped, tag = 'scratch operand']
  #allocation3 [shape = 's32[2,1]{1,0:T(2,128)}', space=vmem, size = 0x400, scoped, tag = 'scratch operand']
  %s0 = inlined_call_operand.hbm [shape: f32[2,1024], index: 0, kind: input, shape index: {}]
  %s1 = inlined_call_operand.hbm [shape: f32[2,1024], index: 1, kind: input, shape index: {}]
  %s2 = inlined_call_operand.vmem [shape: f32[2,1], index: 2, kind: output, shape index: {}]
  %s3 = sld [smem:[#allocation0]]
  $region34: #{tpu_custom_call.1} parent=0
    _
  %s5 = ssub.s32 1, %s3
  %s6 = scalar_select 0, %s5, %s3
  $region1: #{tpu_custom_call.1} parent=0
    #allocation4 [shape = 'u8[8192]{0}', space=vmem, size = 0x2000, scoped, tag = 'input window, operand 0, single buffered']
    #allocation5 [shape = 's32[1]{0}', space=sflag, size = 0x4, scoped, tag = 'scoped memory for tpu_custom_call.1']
    #allocation6 [shape = 'u8[8192]{0}', space=vmem, size = 0x2000, scoped, tag = 'input window, operand 1, single buffered']
    #allocation7 [shape = 's32[1]{0}', space=sflag, size = 0x4, scoped, tag = 'scoped memory for tpu_custom_call.1']
    %7 = vsyncpa [#allocation5], 0
    %8 = vsyncpa [#allocation7], 0
    // Predicated region
    $region2: #{tpu_custom_call.1} parent=1 // pred_check
      _
    $region3: #{tpu_custom_call.1} parent=1 // pred_check_branch
      %10 = sbr.rel (0) target = $region5
    $region4: #{tpu_custom_call.1} parent=1 // pred_region
      %s12 = ssub.s32 256, 256
      %13 = vsyncadd [#allocation5], %s12
      %s15 = sshll.u32 [#allocation4], 4
      %s16 = int_to_ptr.vmem [resolvable:$true] %s15
      %18 = dma.hbm_to_vmem [thread:$0]  %s0, 256, %s16, [#allocation5]
    $region5: #{tpu_custom_call.1} parent=1 // pred_fallthru
      _
    // Predicated region
    $region6: #{tpu_custom_call.1} parent=1 // pred_check
      _
    $region7: #{tpu_custom_call.1} parent=1 // pred_check_branch
      %20 = sbr.rel (0) target = $region9
    $region8: #{tpu_custom_call.1} parent=1 // pred_region
      %s22 = ssub.s32 256, 256
      %23 = vsyncadd [#allocation7], %s22
      %s25 = sshll.u32 [#allocation6], 4
      %s26 = int_to_ptr.vmem [resolvable:$true] %s25
      %28 = dma.hbm_to_vmem [thread:$0]  %s1, 256, %s26, [#allocation7]
    $region9: #{tpu_custom_call.1} parent=1 // pred_fallthru
      _
    // Predicated region
    $region10: #{tpu_custom_call.1} parent=1 // pred_check
      _
    $region11: #{tpu_custom_call.1} parent=1 // pred_check_branch
      %30 = sbr.rel (0) target = $region13
    $region12: #{tpu_custom_call.1} parent=1 // pred_region
      %31 = dma.done [#allocation5], 256
    $region13: #{tpu_custom_call.1} parent=1 // pred_fallthru
      _
    // Predicated region
    $region14: #{tpu_custom_call.1} parent=1 // pred_check
      _
    $region15: #{tpu_custom_call.1} parent=1 // pred_check_branch
      %33 = sbr.rel (0) target = $region17
    $region16: #{tpu_custom_call.1} parent=1 // pred_region
      %34 = dma.done [#allocation7], 256
    $region17: #{tpu_custom_call.1} parent=1 // pred_fallthru
      _
    %p35 = scmp.eq.s32.totalorder 0, 0
    // Predicated region
    $region18: #{tpu_custom_call.1} parent=1 // pred_check
      %p36 = pneg %p35
    $region19: #{tpu_custom_call.1} parent=1 // pred_check_branch
      %38 = sbr.rel (%p36) target = $region21
    $region20: #{tpu_custom_call.1} parent=1 // pred_region
      %vm39 = vcmask 1024
      %40 = vst.msk [vmem:[#allocation2] sm:$0x3] %vm39, 0
      %41 = vst.msk [vmem:[#allocation3] sm:$0x3] %vm39, 0
    $region21: #{tpu_custom_call.1} parent=1 // pred_fallthru
      _
    %v42 = vld [vmem:[#allocation4] sm:$0xff]
    %v43 = vld [vmem:[#allocation4 + $0x8] sm:$0xff]
    %vm44 = vcmp.ge.f32.partialorder %v42, 0.5
    %vm45 = vcmp.ge.f32.partialorder %v43, 0.5
    %v46 = vld [vmem:[#allocation6] sm:$0xff]
    %v47 = vld [vmem:[#allocation6 + $0x8] sm:$0xff]
    %vm48 = vcmp.ge.f32.partialorder %v46, 0.5
    %vm49 = vcmp.ge.f32.partialorder %v47, 0.5
    %v50 = vld [vmem:[#allocation2] sm:$0x3]
    %vm51 = vmand %vm44, %vm48
    %vm52 = vmand %vm45, %vm49
    %v53 = vsel %vm51, 1, 0
    %v54 = vsel %vm52, 1, 0
    %v55 = vcombine.high %v53, %v53
    %v57 = vunpack.c.l.s4 1983009808
    %v58 = vunpack.c.0.s8 %v57
    %v59 = vlaneseq
    %v60 = vshrl.u32 %v59, 7
    %v61 = vsub.s32 %v58, %v60
    %v62 = vrot.slane %v53, %v61
    %v64 = vunpack.c.l.s4 1983009808
    %v65 = vunpack.c.0.s8 %v64
    %v66 = vlaneseq
    %v67 = vshrl.u32 %v66, 7
    %v68 = vsub.s32 %v65, %v67
    %v69 = vrot.slane %v55, %v68
    %v70 = vcombine.high %v62, %v62
    %v71 = vcombine.high %v69, %v69
    %v72 = vcombine.high %v54, %v54
    %v74 = vunpack.c.l.s4 1983009808
    %v75 = vunpack.c.0.s8 %v74
    %v76 = vlaneseq
    %v77 = vshrl.u32 %v76, 7
    %v78 = vsub.s32 %v75, %v77
    %v79 = vrot.slane %v54, %v78
    %v81 = vunpack.c.l.s4 1983009808
    %v82 = vunpack.c.0.s8 %v81
    %v83 = vlaneseq
    %v84 = vshrl.u32 %v83, 7
    %v85 = vsub.s32 %v82, %v84
    %v86 = vrot.slane %v72, %v85
    %v87 = vcombine.high %v79, %v79
    %v88 = vcombine.high %v86, %v86
    %vm89 = vcmask 1041408
    %v90 = vsel %vm89, %v62, 0
    %v91 = vsel %vm89, %v70, 0
    %v92 = vsel %vm89, %v69, 0
    %v93 = vsel %vm89, %v71, 0
    %v94 = vsel %vm89, %v79, 0
    %v95 = vadd.s32 %v90, %v94
    %v96 = vsel %vm89, %v87, 0
    %v97 = vadd.s32 %v91, %v96
    %v98 = vsel %vm89, %v86, 0
    %v99 = vadd.s32 %v92, %v98
    %v100 = vsel %vm89, %v88, 0
    %v101 = vadd.s32 %v93, %v100
    %v102 = vadd.s32 %v95, %v97
    %v103 = vadd.s32 %v99, %v101
    %v104 = vadd.s32 %v102, %v103
    %v105 = vand.u32 %v104, 65535
    %v106 = vshrl.u32 %v104, 16
    %v107 = vcvt.s32.f32 %v105
    %v108 = vcvt.s32.f32 %v106
    %109 = vadd.xlane.f32.xlu0 %v107
    %v110 = vpop.xlane.xlu0 %109
    %111 = vadd.xlane.f32.xlu0 %v108
    %v112 = vpop.xlane.xlu0 %111
    %v113 = vcvt.f32.s32 %v110
    %v114 = vcvt.f32.s32 %v112
    %v115 = vshll.u32 %v114, 16
    %v116 = vadd.s32 %v115, %v113
    %v117 = vadd.s32 %v50, %v116
    %vm118 = vcmask 1024
    %119 = vst.msk [vmem:[#allocation2] sm:$0x3] %vm118, %v117
    %v120 = vld [vmem:[#allocation3] sm:$0x3]
    %vm121 = vmor %vm44, %vm48
    %vm122 = vmor %vm45, %vm49
    %v123 = vsel %vm121, 1, 0
    %v124 = vsel %vm122, 1, 0
    %v125 = vcombine.high %v123, %v123
    %v127 = vunpack.c.l.s4 1983009808
    %v128 = vunpack.c.0.s8 %v127
    %v129 = vlaneseq
    %v130 = vshrl.u32 %v129, 7
    %v131 = vsub.s32 %v128, %v130
    %v132 = vrot.slane %v123, %v131
    %v134 = vunpack.c.l.s4 1983009808
    %v135 = vunpack.c.0.s8 %v134
    %v136 = vlaneseq
    %v137 = vshrl.u32 %v136, 7
    %v138 = vsub.s32 %v135, %v137
    %v139 = vrot.slane %v125, %v138
    %v140 = vcombine.high %v132, %v132
    %v141 = vcombine.high %v139, %v139
    %v142 = vcombine.high %v124, %v124
    %v144 = vunpack.c.l.s4 1983009808
    %v145 = vunpack.c.0.s8 %v144
    %v146 = vlaneseq
    %v147 = vshrl.u32 %v146, 7
    %v148 = vsub.s32 %v145, %v147
    %v149 = vrot.slane %v124, %v148
    %v151 = vunpack.c.l.s4 1983009808
    %v152 = vunpack.c.0.s8 %v151
    %v153 = vlaneseq
    %v154 = vshrl.u32 %v153, 7
    %v155 = vsub.s32 %v152, %v154
    %v156 = vrot.slane %v142, %v155
    %v157 = vcombine.high %v149, %v149
    %v158 = vcombine.high %v156, %v156
    %v159 = vsel %vm89, %v132, 0
    %v160 = vsel %vm89, %v140, 0
    %v161 = vsel %vm89, %v139, 0
    %v162 = vsel %vm89, %v141, 0
    %v163 = vsel %vm89, %v149, 0
    %v164 = vadd.s32 %v159, %v163
    %v165 = vsel %vm89, %v157, 0
    %v166 = vadd.s32 %v160, %v165
    %v167 = vsel %vm89, %v156, 0
    %v168 = vadd.s32 %v161, %v167
    %v169 = vsel %vm89, %v158, 0
    %v170 = vadd.s32 %v162, %v169
    %v171 = vadd.s32 %v164, %v166
    %v172 = vadd.s32 %v168, %v170
    %v173 = vadd.s32 %v171, %v172
    %v174 = vand.u32 %v173, 65535
    %v175 = vshrl.u32 %v173, 16
    %v176 = vcvt.s32.f32 %v174
    %v177 = vcvt.s32.f32 %v175
    %178 = vadd.xlane.f32.xlu0 %v176
    %v179 = vpop.xlane.xlu0 %178
    %180 = vadd.xlane.f32.xlu0 %v177
    %v181 = vpop.xlane.xlu0 %180
    %v182 = vcvt.f32.s32 %v179
    %v183 = vcvt.f32.s32 %v181
    %v184 = vshll.u32 %v183, 16
    %v185 = vadd.s32 %v184, %v182
    %v186 = vadd.s32 %v120, %v185
    %187 = vst.msk [vmem:[#allocation3] sm:$0x3] %vm118, %v186
    // Predicated region
    $region22: #{tpu_custom_call.1} parent=1 // pred_check
      %p188 = pneg %p35
    $region23: #{tpu_custom_call.1} parent=1 // pred_check_branch
      %190 = sbr.rel (%p188) target = $region25
    $region24: #{tpu_custom_call.1} parent=1 // pred_region
      %v191 = vld [vmem:[#allocation2] sm:$0x3]
      %v192 = vcvt.s32.f32 %v191
      %v193 = vld [vmem:[#allocation3] sm:$0x3]
      %v194 = vcvt.s32.f32 %v193
      %v195 = vadd.f32 %v192, 1e-06
      %v196 = vadd.f32 %v194, 1e-06
      %v197 = vrcp.pop %v196
      %v198 = vmul.f32 %v195, %v197
      %199 = vst.msk [vmem:[%s2] sm:$0x3] %vm118, %v198
    $region25: #{tpu_custom_call.1} parent=1 // pred_fallthru
      _
    // Predicated region
    $region26: #{tpu_custom_call.1} parent=1 // pred_check
      _
    $region27: #{tpu_custom_call.1} parent=1 // pred_check_branch
      %201 = sbr.rel (0) target = $region29
    $region28: #{tpu_custom_call.1} parent=1 // pred_region
      _
    $region29: #{tpu_custom_call.1} parent=1 // pred_fallthru
      _
    // Predicated region
    $region30: #{tpu_custom_call.1} parent=1 // pred_check
      _
    $region31: #{tpu_custom_call.1} parent=1 // pred_check_branch
      %203 = sbr.rel (0) target = $region33
    $region32: #{tpu_custom_call.1} parent=1 // pred_region
      _
    $region33: #{tpu_custom_call.1} parent=1 // pred_fallthru
      _
    %204 = vsyncpa [#allocation5], 1
    %205 = vsyncpa [#allocation7], 1

</llo_original>
